<compile_context>
chip_gen: v7x
topology: tpu7x:2x2x1
jax: 0.10.0
libtpu: 0.0.40
codegen_flags: <defaults>
</compile_context>

<pallas_src>
import math

import jax
import jax.numpy as jnp
import numpy as np
from jax import lax
from jax.experimental import pallas as pl
from jax.experimental.pallas import tpu as pltpu


_LOSS_ORDER = ("rot_loss", "trans_loss", "latent_loss", "rot_distance", "trans_distance")
_LANE = 128


def _round_up(x, m):
    return ((x + m - 1) // m) * m


# ----------------------------------------------------------------------------- fused kernel

def _make_fused_kernel(want, symm, layout):
    """Fused criterion kernel for a static (want, symm, layout) combination.

    layout holds static python ints / dicts:
      pose_rows, rot_rows, o_rl, o_rd, o_tl, o_td, n_rl, n_tl, n_lat,
      w_out, slots (scalar name -> lane), r_rd, r_td.
    """
    w_rl, w_tl, w_ll, w_rd, w_td = want
    has_pose = layout["pose_rows"] > 0
    rot_rows = layout["rot_rows"]
    rows_per_pose = 2 if symm else 3
    half = 0.5 * math.pi

    def quat(s, c, base):
        # quaternion of (roll, pitch, yaw)*pi from half-angle sin/cos rows
        if symm:                                      # pitch == 0: sp = 0, cp = 1
            sr, sy = s[base:base + 1], s[base + 1:base + 2]
            cr, cy = c[base:base + 1], c[base + 1:base + 2]
            return (sr * cy, sr * sy, cr * sy, cr * cy)
        sr, sp, sy = s[base:base + 1], s[base + 1:base + 2], s[base + 2:base + 3]
        cr, cp, cy = c[base:base + 1], c[base + 1:base + 2], c[base + 2:base + 3]
        return (sr * cp * cy - cr * sp * sy,
                cr * sp * cy + sr * cp * sy,
                cr * cp * sy - sr * sp * cy,
                cr * cp * cy + sr * sp * sy)

    def rmat(s, c, base):
        # R = Rz2 @ Rx @ Rz of compute_RotMats, entries expanded analytically.
        # Full-angle sin/cos recovered via double-angle identities so the single
        # whole-tile half-angle sin/cos pass is reused (no extra EUP work).
        sr, cr = s[base:base + 1], c[base:base + 1]
        if symm:
            sy, cy = s[base + 1:base + 2], c[base + 1:base + 2]
        else:
            sp, cp = s[base + 1:base + 2], c[base + 1:base + 2]
            sy, cy = s[base + 2:base + 3], c[base + 2:base + 3]
        sa = -2.0 * sr * cr                 # sin(-roll*pi)
        ca = cr * cr - sr * sr              # cos(-roll*pi)
        st = -2.0 * sy * cy                 # sin(-yaw*pi)
        ct = cy * cy - sy * sy              # cos(-yaw*pi)
        if symm:                            # pitch == 0 -> se = 1, ce = 0
            return (ct * ca, -ct * sa, st,
                    st * ca, -st * sa, -ct,
                    sa, ca, None)           # R22 == 0 exactly
        se = cp * cp - sp * sp              # sin(pi/2 + pitch*pi) =  cos(pitch*pi)
        ce = -2.0 * sp * cp                 # cos(pi/2 + pitch*pi) = -sin(pitch*pi)
        return (ct * ca - st * ce * sa, -ct * sa - st * ce * ca, st * se,
                st * ca + ct * ce * sa, -st * sa + ct * ce * ca, -ct * se,
                se * sa, se * ca, ce)

    def kernel(*refs):
        i = 0
        pose = None
        if has_pose:
            pose = refs[i][...]                      # (pose_rows, Wp)
            i += 1
        lat_ref = None
        if w_ll:
            lat_ref = refs[i]
            i += 1
        out_ref = refs[i]

        s = c = None
        if rot_rows:
            ang = pose[0:rot_rows, :] * half         # all rotation rows at once
            s = jnp.sin(ang)                         # ONE whole-tile sin
            c = jnp.cos(ang)                         # ONE whole-tile cos

        scalars = {}

        if w_rl:
            bp = layout["o_rl"]
            bg = bp + rows_per_pose
            sq = None                                # element-wise accumulate (no concat)
            for a, b in zip(quat(s, c, bp), quat(s, c, bg)):
                d = a - b
                sq = d * d if sq is None else sq + d * d
            scalars["rot_loss"] = jnp.sum(sq) / (4.0 * layout["n_rl"])

        rotd = None
        if w_rd:
            bp = layout["o_rd"]
            bg = bp + rows_per_pose
            tr = None                                # trace(Rp @ Rg^T) = sum_ij Rp*Rg
            for a, b in zip(rmat(s, c, bp), rmat(s, c, bg)):
                if a is None:                        # exactly-zero entry in both
                    continue
                prod = a * b
                tr = prod if tr is None else tr + prod
            # cos(angle); arccos -> degrees is applied in the jitted wrapper
            rotd = jnp.clip((tr - 1.0) * 0.5, -1.0, 1.0)

        if w_tl:
            o = layout["o_tl"]
            d = pose[o:o + 3, :] - pose[o + 3:o + 6, :]
            scalars["trans_loss"] = jnp.sum(d * d) / (3.0 * layout["n_tl"])

        transd = None
        if w_td:
            o = layout["o_td"]
            tp = pose[o:o + 3, :]
            tg = pose[o + 3:o + 6, :]
            dx = tg[0:1, :] * tg[1:2, :] - tp[0:1, :] * tp[1:2, :]
            dy = tg[0:1, :] * tg[2:3, :] - tp[0:1, :] * tp[2:3, :]
            transd = jnp.sqrt(dx * dx + dy * dy) * 100.0

        if w_ll:
            lat = lat_ref[...]                       # (2, Wl) lane-dense
            d = lat[0:1, :] - lat[1:2, :]
            scalars["latent_loss"] = jnp.sum(d * d) / float(layout["n_lat"])

        # ---- single lane-dense output slab ----
        W = layout["w_out"]
        slots = layout["slots"]
        if slots:
            lane = lax.broadcasted_iota(jnp.int32, (1, W), 1)
            row = jnp.zeros((1, W), jnp.float32)
            for name, slot in slots.items():
                row = jnp.where(lane == slot, scalars[name], row)
            out_ref[0:1, :] = row                    # full-width unmasked store
        if w_rd:
            out_ref[layout["r_rd"]:layout["r_rd"] + 1, :] = rotd
        if w_td:
            out_ref[layout["r_td"]:layout["r_td"] + 1, :] = transd

    return kernel


# ----------------------------------------------------------------------------- criterion

class SetCriterionPallas:
    """JAX/Pallas port of SetCriterion.forward for the losses in its loss_map."""

    def __init__(self, category: str = "laptop"):
        # weight_dict kept for API parity; forward() returns UNWEIGHTED losses,
        # exactly like the original SetCriterion.forward.
        self.weight_dict = {'rot_loss': 10, 'trans_loss': 5, 'latent_loss': 1,
                            'rot_distance': 0, 'trans_distance': 0}
        self.categories = ['bottle', 'bowl', 'camera', 'can', 'laptop', 'mug']
        assert category in self.categories
        self.symm = category in ('bottle', 'can', 'bowl')
        self.loss_map = {
            'rot_loss': self.compute_quat_loss,
            'trans_loss': self.compute_l2_loss,
            'latent_loss': self.compute_l2_loss,
            'rot_distance': self.compute_rot_loss,
            'trans_distance': self.compute_trans_loss,
        }
        self._fused_cache = {}   # want-tuple -> jitted fused fn

    # ------------------------------------------------------------------ forward
    def __call__(self, outputs, targets, update_losses):
        for loss in update_losses:
            assert loss in self.loss_map, f'do you really want to compute {loss} loss?'
        return self._run(outputs, targets, tuple(update_losses))

    def get_loss(self, loss, outputs, targets):
        assert loss in self.loss_map, f'do you really want to compute {loss} loss?'
        return self.loss_map[loss](outputs, targets, name=loss)

    # per-loss entry points (API compatibility) — each is a single-loss fused call
    def compute_quat_loss(self, input, gt, name):
        return self._run({name: input}, {name: gt}, (name,))

    def compute_l2_loss(self, input, targets, name):
        return self._run({name: input}, {name: targets}, (name,))

    def compute_rot_loss(self, input, targets, name):
        return self._run({name: input}, {name: targets}, (name,))

    def compute_trans_loss(self, T, T_gt, name):
        return self._run({name: T}, {name: T_gt}, (name,))

    # ------------------------------------------------------------------ dispatch
    def _run(self, outputs, targets, losses):
        for nm in losses:
            assert nm in _LOSS_ORDER, f'do you really want to compute {nm} loss?'
        want = tuple(nm in losses for nm in _LOSS_ORDER)
        if not any(want):
            return {}
        fn = self._fused_cache.get(want)
        if fn is None:
            fn = self._build_fused_fn(want)
            self._fused_cache[want] = fn
        args = []
        for nm, w in zip(_LOSS_ORDER, want):
            if w:                                    # each loss uses its OWN tensors
                args += [outputs[nm], targets[nm]]
        return dict(fn(*args))

    def _build_fused_fn(self, want):
        # NOTE: at the tiny sizes used here a plain jitted jnp implementation
        # would also be fine; the fused kernel keeps all losses in one custom
        # call with 2 input DMAs and 1 lane-dense output DMA.
        w_rl, w_tl, w_ll, w_rd, w_td = want
        symm = self.symm

        def fn(*arrays):
            # per-loss (pred, gt) pairs, order fixed by _LOSS_ORDER / want
            arrs = {}
            idx = 0
            for nm, w in zip(_LOSS_ORDER, want):
                if w:
                    arrs[nm] = (arrays[idx].astype(jnp.float32),
                                arrays[idx + 1].astype(jnp.float32))
                    idx += 2

            # -------------------------------------------------- static layout
            pose_losses = [nm for nm in ("rot_loss", "rot_distance",
                                         "trans_loss", "trans_distance") if nm in arrs]
            n = {nm: arrs[nm][0].shape[0] for nm in pose_losses}
            w_pose = _round_up(max(n.values()), _LANE) if pose_losses else 0
            w_out = w_pose if w_pose else _LANE

            rows = []

            def add_rot(nm):
                p, g = arrs[nm]
                pt, gt_ = jnp.transpose(p), jnp.transpose(g)          # (3, N)
                if symm:   # pitch is forced to 0 -> drop its rows at trace time
                    pt = jnp.concatenate([pt[0:1], pt[2:3]], axis=0)
                    gt_ = jnp.concatenate([gt_[0:1], gt_[2:3]], axis=0)
                blk = jnp.concatenate([pt, gt_], axis=0)
                rows.append(jnp.pad(blk, ((0, 0), (0, w_pose - blk.shape[1]))))
                return blk.shape[0]

            def add_trans(nm):
                p, g = arrs[nm]
                blk = jnp.concatenate([jnp.transpose(p), jnp.transpose(g)], axis=0)
                rows.append(jnp.pad(blk, ((0, 0), (0, w_pose - blk.shape[1]))))
                return blk.shape[0]

            r = 0
            o_rl = o_rd = o_tl = o_td = 0
            if w_rl:
                o_rl = r; r += add_rot("rot_loss")
            if w_rd:
                o_rd = r; r += add_rot("rot_distance")
            rot_rows = r
            if w_tl:
                o_tl = r; r += add_trans("trans_loss")
            if w_td:
                o_td = r; r += add_trans("trans_distance")
            pose_rows = r

            lat_slab = None
            n_lat = 0
            if w_ll:
                lp, lg = arrs["latent_loss"]
                n_lat = int(np.prod(lp.shape))
                w_lat = _round_up(n_lat, _LANE)
                lat_slab = jnp.concatenate([lp.reshape(1, -1), lg.reshape(1, -1)], axis=0)
                lat_slab = jnp.pad(lat_slab, ((0, 0), (0, w_lat - n_lat)))

            slots = {}
            for nm in ("rot_loss", "trans_loss", "latent_loss"):
                if nm in arrs:
                    slots[nm] = len(slots)

            r_out = 1 if slots else 0
            r_rd = r_td = 0
            if w_rd:
                r_rd = r_out; r_out += 1
            if w_td:
                r_td = r_out; r_out += 1

            layout = dict(pose_rows=pose_rows, rot_rows=rot_rows,
                          o_rl=o_rl, o_rd=o_rd, o_tl=o_tl, o_td=o_td,
                          n_rl=n.get("rot_loss", 1), n_tl=n.get("trans_loss", 1),
                          n_lat=max(n_lat, 1),
                          w_out=w_out, slots=slots, r_rd=r_rd, r_td=r_td)

            ops = []
            if pose_rows:
                ops.append(jnp.concatenate(rows, axis=0))      # (pose_rows, w_pose)
            if lat_slab is not None:
                ops.append(lat_slab)                            # (2, w_lat)

            # -------------------------------------------------- cost estimate
            in_bytes = sum(int(np.prod(o.shape)) * 4 for o in ops)
            out_bytes = r_out * w_out * 4
            transc = 2 * rot_rows * max(w_pose, 1)              # 1 whole-tile sin + cos
            if w_td:
                transc += w_pose                                # sqrt
            cost = pl.CostEstimate(
                flops=int(max(1, 60 * pose_rows * max(w_pose, 1) + 6 * max(n_lat, 1))),
                transcendentals=int(max(1, transc)),
                bytes_accessed=int(in_bytes + out_bytes),
            )

            kernel = _make_fused_kernel(want, symm, layout)
            out = pl.pallas_call(
                kernel,
                out_shape=jax.ShapeDtypeStruct((r_out, w_out), jnp.float32),
                compiler_params=pltpu.CompilerParams(
                    allow_input_fusion=[True] * len(ops)),
                cost_estimate=cost,
            )(*ops)

            result = {}
            if slots:
                for nm, slot in slots.items():
                    result[nm] = out[0, slot]
            if w_rd:
                nrd = n["rot_distance"]
                result["rot_distance"] = jnp.arccos(out[r_rd, :nrd]) * (180.0 / math.pi)
            if w_td:
                ntd = n["trans_distance"]
                result["trans_distance"] = out[r_td, :ntd]
            return result

        # one jit = one dispatch for packing + fused kernel + unpacking
        return jax.jit(fn)


# ----------------------------------------------------------------------------- pure-JAX reference (sanity check)

def _ref_quat(x, symm):
    x = x * jnp.pi
    if symm:
        x = x.at[:, 1].set(0.0)
    r, p, y = x[:, 0:1] / 2, x[:, 1:2] / 2, x[:, 2:3] / 2
    qx = jnp.sin(r) * jnp.cos(p) * jnp.cos(y) - jnp.cos(r) * jnp.sin(p) * jnp.sin(y)
    qy = jnp.cos(r) * jnp.sin(p) * jnp.cos(y) + jnp.sin(r) * jnp.cos(p) * jnp.sin(y)
    qz = jnp.cos(r) * jnp.cos(p) * jnp.sin(y) - jnp.sin(r) * jnp.sin(p) * jnp.cos(y)
    qw = jnp.cos(r) * jnp.cos(p) * jnp.cos(y) + jnp.sin(r) * jnp.sin(p) * jnp.sin(y)
    return jnp.concatenate([qx, qy, qz, qw], axis=1)


def _ref_rotmats(rot):
    a, e, t = -rot[:, 0], jnp.pi / 2 + rot[:, 1], -rot[:, 2]
    sa, ca = jnp.sin(a), jnp.cos(a)
    se, ce = jnp.sin(e), jnp.cos(e)
    st, ct = jnp.sin(t), jnp.cos(t)
    z = jnp.zeros_like(a)
    o = jnp.ones_like(a)
    Rz = jnp.stack([ca, -sa, z, sa, ca, z, z, z, o], -1).reshape(-1, 3, 3)
    Rx = jnp.stack([o, z, z, z, ce, -se, z, se, ce], -1).reshape(-1, 3, 3)
    Rz2 = jnp.stack([ct, -st, z, st, ct, z, z, z, o], -1).reshape(-1, 3, 3)
    return jnp.einsum('nij,njk,nkl->nil', Rz2, Rx, Rz)


# ----------------------------------------------------------------------------- main

if __name__ == "__main__":
    key = jax.random.PRNGKey(0)
    k1, k2, k3, k4, k5, k6 = jax.random.split(key, 6)

    N, D = 8, 32  # small batch of pose predictions, latent dim 32
    outputs = {
        'rot_loss':    jax.random.uniform(k1, (N, 3), jnp.float32, -1.0, 1.0),
        'trans_loss':  jax.random.uniform(k2, (N, 3), jnp.float32, -1.0, 1.0),
        'latent_loss': jax.random.normal(k3, (N, D), jnp.float32),
    }
    targets = {
        'rot_loss':    jax.random.uniform(k4, (N, 3), jnp.float32, -1.0, 1.0),
        'trans_loss':  jax.random.uniform(k5, (N, 3), jnp.float32, -1.0, 1.0),
        'latent_loss': jax.random.normal(k6, (N, D), jnp.float32),
    }
    # distances conventionally evaluated on the same pose / translation tensors
    outputs['rot_distance'] = outputs['rot_loss']
    targets['rot_distance'] = targets['rot_loss']
    outputs['trans_distance'] = outputs['trans_loss']
    targets['trans_distance'] = targets['trans_loss']

    update_losses = ['rot_loss', 'trans_loss', 'latent_loss',
                     'rot_distance', 'trans_distance']

    # exercise both the non-symmetric and symmetric trace-time specialisations
    for category in ("laptop", "bottle"):
        criterion = SetCriterionPallas(category=category)
        losses = criterion(outputs, targets, update_losses)
        losses = jax.tree_util.tree_map(jax.block_until_ready, losses)

        # ---- sanity check against a pure-JAX reference ----
        symm = criterion.symm
        ref_rot = jnp.mean((_ref_quat(outputs['rot_loss'], symm)
                            - _ref_quat(targets['rot_loss'], symm)) ** 2)
        ref_trans = jnp.mean((outputs['trans_loss'] - targets['trans_loss']) ** 2)
        ref_latent = jnp.mean((outputs['latent_loss'] - targets['latent_loss']) ** 2)

        rp_ = outputs['rot_distance'] * jnp.pi
        rg_ = targets['rot_distance'] * jnp.pi
        if symm:
            rp_ = rp_.at[:, 1].set(0.0)
            rg_ = rg_.at[:, 1].set(0.0)
        Rp = _ref_rotmats(rp_)
        Rg = _ref_rotmats(rg_)
        tr = jnp.einsum('nij,nij->n', Rp, Rg)
        ref_rotd = jnp.arccos(jnp.clip((tr - 1.0) / 2.0, -1.0, 1.0)) * 180.0 / jnp.pi

        tpv = outputs['trans_distance'][:, 0:1] * outputs['trans_distance'][:, 1:3]
        tgv = targets['trans_distance'][:, 0:1] * targets['trans_distance'][:, 1:3]
        ref_transd = jnp.linalg.norm(tgv - tpv, axis=1) * 100.0

        np.testing.assert_allclose(np.asarray(losses['rot_loss']), np.asarray(ref_rot),
                                   rtol=1e-4, atol=1e-5)
        np.testing.assert_allclose(np.asarray(losses['trans_loss']), np.asarray(ref_trans),
                                   rtol=1e-5, atol=1e-5)
        np.testing.assert_allclose(np.asarray(losses['latent_loss']), np.asarray(ref_latent),
                                   rtol=1e-5, atol=1e-5)
        np.testing.assert_allclose(np.asarray(losses['rot_distance']), np.asarray(ref_rotd),
                                   rtol=1e-3, atol=1e-1)
        np.testing.assert_allclose(np.asarray(losses['trans_distance']), np.asarray(ref_transd),
                                   rtol=1e-5, atol=1e-4)

    print("KERNEL_OK")
</pallas_src>

<mosaic_0001>
module attributes {stable_mosaic.version = 11 : i64} {
  func.func @kernel(%arg0: memref<24x128xf32, #tpu.memory_space<vmem>>, %arg1: memref<2x256xf32, #tpu.memory_space<vmem>>, %arg2: memref<3x128xf32, #tpu.memory_space<vmem>>) attributes {dimension_semantics = [], scalar_prefetch = 0 : i64, scratch_operands = 0 : i64, tpu.core_type = #tpu.core_type<tc>} {
    %c0 = arith.constant 0 : index
    %c0_0 = arith.constant 0 : index
    %0 = vector.load %arg0[%c0, %c0_0] : memref<24x128xf32, #tpu.memory_space<vmem>>, vector<24x128xf32>
    %1 = vector.extract_strided_slice %0 {offsets = [0, 0], sizes = [12, 128], strides = [1, 1]} : vector<24x128xf32> to vector<12x128xf32>
    %cst = arith.constant 1.57079637 : f32
    %2 = vector.broadcast %cst : f32 to vector<12x128xf32>
    %3 = arith.mulf %1, %2 : vector<12x128xf32>
    %4 = math.sin %3 : vector<12x128xf32>
    %5 = math.cos %3 : vector<12x128xf32>
    %6 = vector.extract_strided_slice %4 {offsets = [0, 0], sizes = [1, 128], strides = [1, 1]} : vector<12x128xf32> to vector<1x128xf32>
    %7 = vector.extract_strided_slice %4 {offsets = [1, 0], sizes = [1, 128], strides = [1, 1]} : vector<12x128xf32> to vector<1x128xf32>
    %8 = vector.extract_strided_slice %4 {offsets = [2, 0], sizes = [1, 128], strides = [1, 1]} : vector<12x128xf32> to vector<1x128xf32>
    %9 = vector.extract_strided_slice %5 {offsets = [0, 0], sizes = [1, 128], strides = [1, 1]} : vector<12x128xf32> to vector<1x128xf32>
    %10 = vector.extract_strided_slice %5 {offsets = [1, 0], sizes = [1, 128], strides = [1, 1]} : vector<12x128xf32> to vector<1x128xf32>
    %11 = vector.extract_strided_slice %5 {offsets = [2, 0], sizes = [1, 128], strides = [1, 1]} : vector<12x128xf32> to vector<1x128xf32>
    %12 = arith.mulf %6, %10 : vector<1x128xf32>
    %13 = arith.mulf %12, %11 : vector<1x128xf32>
    %14 = arith.mulf %9, %7 : vector<1x128xf32>
    %15 = arith.mulf %14, %8 : vector<1x128xf32>
    %16 = arith.subf %13, %15 : vector<1x128xf32>
    %17 = arith.mulf %9, %7 : vector<1x128xf32>
    %18 = arith.mulf %17, %11 : vector<1x128xf32>
    %19 = arith.mulf %6, %10 : vector<1x128xf32>
    %20 = arith.mulf %19, %8 : vector<1x128xf32>
    %21 = arith.addf %18, %20 : vector<1x128xf32>
    %22 = arith.mulf %9, %10 : vector<1x128xf32>
    %23 = arith.mulf %22, %8 : vector<1x128xf32>
    %24 = arith.mulf %6, %7 : vector<1x128xf32>
    %25 = arith.mulf %24, %11 : vector<1x128xf32>
    %26 = arith.subf %23, %25 : vector<1x128xf32>
    %27 = arith.mulf %9, %10 : vector<1x128xf32>
    %28 = arith.mulf %27, %11 : vector<1x128xf32>
    %29 = arith.mulf %6, %7 : vector<1x128xf32>
    %30 = arith.mulf %29, %8 : vector<1x128xf32>
    %31 = arith.addf %28, %30 : vector<1x128xf32>
    %32 = vector.extract_strided_slice %4 {offsets = [3, 0], sizes = [1, 128], strides = [1, 1]} : vector<12x128xf32> to vector<1x128xf32>
    %33 = vector.extract_strided_slice %4 {offsets = [4, 0], sizes = [1, 128], strides = [1, 1]} : vector<12x128xf32> to vector<1x128xf32>
    %34 = vector.extract_strided_slice %4 {offsets = [5, 0], sizes = [1, 128], strides = [1, 1]} : vector<12x128xf32> to vector<1x128xf32>
    %35 = vector.extract_strided_slice %5 {offsets = [3, 0], sizes = [1, 128], strides = [1, 1]} : vector<12x128xf32> to vector<1x128xf32>
    %36 = vector.extract_strided_slice %5 {offsets = [4, 0], sizes = [1, 128], strides = [1, 1]} : vector<12x128xf32> to vector<1x128xf32>
    %37 = vector.extract_strided_slice %5 {offsets = [5, 0], sizes = [1, 128], strides = [1, 1]} : vector<12x128xf32> to vector<1x128xf32>
    %38 = arith.mulf %32, %36 : vector<1x128xf32>
    %39 = arith.mulf %38, %37 : vector<1x128xf32>
    %40 = arith.mulf %35, %33 : vector<1x128xf32>
    %41 = arith.mulf %40, %34 : vector<1x128xf32>
    %42 = arith.subf %39, %41 : vector<1x128xf32>
    %43 = arith.mulf %35, %33 : vector<1x128xf32>
    %44 = arith.mulf %43, %37 : vector<1x128xf32>
    %45 = arith.mulf %32, %36 : vector<1x128xf32>
    %46 = arith.mulf %45, %34 : vector<1x128xf32>
    %47 = arith.addf %44, %46 : vector<1x128xf32>
    %48 = arith.mulf %35, %36 : vector<1x128xf32>
    %49 = arith.mulf %48, %34 : vector<1x128xf32>
    %50 = arith.mulf %32, %33 : vector<1x128xf32>
    %51 = arith.mulf %50, %37 : vector<1x128xf32>
    %52 = arith.subf %49, %51 : vector<1x128xf32>
    %53 = arith.mulf %35, %36 : vector<1x128xf32>
    %54 = arith.mulf %53, %37 : vector<1x128xf32>
    %55 = arith.mulf %32, %33 : vector<1x128xf32>
    %56 = arith.mulf %55, %34 : vector<1x128xf32>
    %57 = arith.addf %54, %56 : vector<1x128xf32>
    %58 = arith.subf %16, %42 : vector<1x128xf32>
    %59 = arith.mulf %58, %58 : vector<1x128xf32>
    %60 = arith.subf %21, %47 : vector<1x128xf32>
    %61 = arith.mulf %60, %60 : vector<1x128xf32>
    %62 = arith.addf %59, %61 : vector<1x128xf32>
    %63 = arith.subf %26, %52 : vector<1x128xf32>
    %64 = arith.mulf %63, %63 : vector<1x128xf32>
    %65 = arith.addf %62, %64 : vector<1x128xf32>
    %66 = arith.subf %31, %57 : vector<1x128xf32>
    %67 = arith.mulf %66, %66 : vector<1x128xf32>
    %68 = arith.addf %65, %67 : vector<1x128xf32>
    %69 = vector.shape_cast %68 : vector<1x128xf32> to vector<1x1x128xf32>
    %cst_1 = arith.constant dense<0.000000e+00> : vector<1xf32>
    %70 = vector.multi_reduction <add>, %69, %cst_1 [1, 2] : vector<1x1x128xf32> to vector<1xf32>
    %71 = vector.shape_cast %70 : vector<1xf32> to vector<1x1x1xf32>
    %72 = vector.extract %71[0, 0, 0] : f32 from vector<1x1x1xf32>
    %cst_2 = arith.constant 3.200000e+01 : f32
    %73 = arith.divf %72, %cst_2 : f32
    %74 = vector.extract_strided_slice %4 {offsets = [6, 0], sizes = [1, 128], strides = [1, 1]} : vector<12x128xf32> to vector<1x128xf32>
    %75 = vector.extract_strided_slice %5 {offsets = [6, 0], sizes = [1, 128], strides = [1, 1]} : vector<12x128xf32> to vector<1x128xf32>
    %76 = vector.extract_strided_slice %4 {offsets = [7, 0], sizes = [1, 128], strides = [1, 1]} : vector<12x128xf32> to vector<1x128xf32>
    %77 = vector.extract_strided_slice %5 {offsets = [7, 0], sizes = [1, 128], strides = [1, 1]} : vector<12x128xf32> to vector<1x128xf32>
    %78 = vector.extract_strided_slice %4 {offsets = [8, 0], sizes = [1, 128], strides = [1, 1]} : vector<12x128xf32> to vector<1x128xf32>
    %79 = vector.extract_strided_slice %5 {offsets = [8, 0], sizes = [1, 128], strides = [1, 1]} : vector<12x128xf32> to vector<1x128xf32>
    %cst_3 = arith.constant -2.000000e+00 : f32
    %80 = vector.broadcast %cst_3 : f32 to vector<1x128xf32>
    %81 = arith.mulf %80, %74 : vector<1x128xf32>
    %82 = arith.mulf %81, %75 : vector<1x128xf32>
    %83 = arith.mulf %75, %75 : vector<1x128xf32>
    %84 = arith.mulf %74, %74 : vector<1x128xf32>
    %85 = arith.subf %83, %84 : vector<1x128xf32>
    %cst_4 = arith.constant -2.000000e+00 : f32
    %86 = vector.broadcast %cst_4 : f32 to vector<1x128xf32>
    %87 = arith.mulf %86, %78 : vector<1x128xf32>
    %88 = arith.mulf %87, %79 : vector<1x128xf32>
    %89 = arith.mulf %79, %79 : vector<1x128xf32>
    %90 = arith.mulf %78, %78 : vector<1x128xf32>
    %91 = arith.subf %89, %90 : vector<1x128xf32>
    %92 = arith.mulf %77, %77 : vector<1x128xf32>
    %93 = arith.mulf %76, %76 : vector<1x128xf32>
    %94 = arith.subf %92, %93 : vector<1x128xf32>
    %cst_5 = arith.constant -2.000000e+00 : f32
    %95 = vector.broadcast %cst_5 : f32 to vector<1x128xf32>
    %96 = arith.mulf %95, %76 : vector<1x128xf32>
    %97 = arith.mulf %96, %77 : vector<1x128xf32>
    %98 = arith.mulf %91, %85 : vector<1x128xf32>
    %99 = arith.mulf %88, %97 : vector<1x128xf32>
    %100 = arith.mulf %99, %82 : vector<1x128xf32>
    %101 = arith.subf %98, %100 : vector<1x128xf32>
    %cst_6 = arith.constant 0.000000e+00 : f32
    %102 = vector.broadcast %cst_6 : f32 to vector<1x128xf32>
    %103 = arith.subf %102, %91 : vector<1x128xf32>
    %104 = arith.mulf %103, %82 : vector<1x128xf32>
    %105 = arith.mulf %88, %97 : vector<1x128xf32>
    %106 = arith.mulf %105, %85 : vector<1x128xf32>
    %107 = arith.subf %104, %106 : vector<1x128xf32>
    %108 = arith.mulf %88, %94 : vector<1x128xf32>
    %109 = arith.mulf %88, %85 : vector<1x128xf32>
    %110 = arith.mulf %91, %97 : vector<1x128xf32>
    %111 = arith.mulf %110, %82 : vector<1x128xf32>
    %112 = arith.addf %109, %111 : vector<1x128xf32>
    %cst_7 = arith.constant 0.000000e+00 : f32
    %113 = vector.broadcast %cst_7 : f32 to vector<1x128xf32>
    %114 = arith.subf %113, %88 : vector<1x128xf32>
    %115 = arith.mulf %114, %82 : vector<1x128xf32>
    %116 = arith.mulf %91, %97 : vector<1x128xf32>
    %117 = arith.mulf %116, %85 : vector<1x128xf32>
    %118 = arith.addf %115, %117 : vector<1x128xf32>
    %cst_8 = arith.constant 0.000000e+00 : f32
    %119 = vector.broadcast %cst_8 : f32 to vector<1x128xf32>
    %120 = arith.subf %119, %91 : vector<1x128xf32>
    %121 = arith.mulf %120, %94 : vector<1x128xf32>
    %122 = arith.mulf %94, %82 : vector<1x128xf32>
    %123 = arith.mulf %94, %85 : vector<1x128xf32>
    %124 = vector.extract_strided_slice %4 {offsets = [9, 0], sizes = [1, 128], strides = [1, 1]} : vector<12x128xf32> to vector<1x128xf32>
    %125 = vector.extract_strided_slice %5 {offsets = [9, 0], sizes = [1, 128], strides = [1, 1]} : vector<12x128xf32> to vector<1x128xf32>
    %126 = vector.extract_strided_slice %4 {offsets = [10, 0], sizes = [1, 128], strides = [1, 1]} : vector<12x128xf32> to vector<1x128xf32>
    %127 = vector.extract_strided_slice %5 {offsets = [10, 0], sizes = [1, 128], strides = [1, 1]} : vector<12x128xf32> to vector<1x128xf32>
    %128 = vector.extract_strided_slice %4 {offsets = [11, 0], sizes = [1, 128], strides = [1, 1]} : vector<12x128xf32> to vector<1x128xf32>
    %129 = vector.extract_strided_slice %5 {offsets = [11, 0], sizes = [1, 128], strides = [1, 1]} : vector<12x128xf32> to vector<1x128xf32>
    %cst_9 = arith.constant -2.000000e+00 : f32
    %130 = vector.broadcast %cst_9 : f32 to vector<1x128xf32>
    %131 = arith.mulf %130, %124 : vector<1x128xf32>
    %132 = arith.mulf %131, %125 : vector<1x128xf32>
    %133 = arith.mulf %125, %125 : vector<1x128xf32>
    %134 = arith.mulf %124, %124 : vector<1x128xf32>
    %135 = arith.subf %133, %134 : vector<1x128xf32>
    %cst_10 = arith.constant -2.000000e+00 : f32
    %136 = vector.broadcast %cst_10 : f32 to vector<1x128xf32>
    %137 = arith.mulf %136, %128 : vector<1x128xf32>
    %138 = arith.mulf %137, %129 : vector<1x128xf32>
    %139 = arith.mulf %129, %129 : vector<1x128xf32>
    %140 = arith.mulf %128, %128 : vector<1x128xf32>
    %141 = arith.subf %139, %140 : vector<1x128xf32>
    %142 = arith.mulf %127, %127 : vector<1x128xf32>
    %143 = arith.mulf %126, %126 : vector<1x128xf32>
    %144 = arith.subf %142, %143 : vector<1x128xf32>
    %cst_11 = arith.constant -2.000000e+00 : f32
    %145 = vector.broadcast %cst_11 : f32 to vector<1x128xf32>
    %146 = arith.mulf %145, %126 : vector<1x128xf32>
    %147 = arith.mulf %146, %127 : vector<1x128xf32>
    %148 = arith.mulf %141, %135 : vector<1x128xf32>
    %149 = arith.mulf %138, %147 : vector<1x128xf32>
    %150 = arith.mulf %149, %132 : vector<1x128xf32>
    %151 = arith.subf %148, %150 : vector<1x128xf32>
    %cst_12 = arith.constant 0.000000e+00 : f32
    %152 = vector.broadcast %cst_12 : f32 to vector<1x128xf32>
    %153 = arith.subf %152, %141 : vector<1x128xf32>
    %154 = arith.mulf %153, %132 : vector<1x128xf32>
    %155 = arith.mulf %138, %147 : vector<1x128xf32>
    %156 = arith.mulf %155, %135 : vector<1x128xf32>
    %157 = arith.subf %154, %156 : vector<1x128xf32>
    %158 = arith.mulf %138, %144 : vector<1x128xf32>
    %159 = arith.mulf %138, %135 : vector<1x128xf32>
    %160 = arith.mulf %141, %147 : vector<1x128xf32>
    %161 = arith.mulf %160, %132 : vector<1x128xf32>
    %162 = arith.addf %159, %161 : vector<1x128xf32>
    %cst_13 = arith.constant 0.000000e+00 : f32
    %163 = vector.broadcast %cst_13 : f32 to vector<1x128xf32>
    %164 = arith.subf %163, %138 : vector<1x128xf32>
    %165 = arith.mulf %164, %132 : vector<1x128xf32>
    %166 = arith.mulf %141, %147 : vector<1x128xf32>
    %167 = arith.mulf %166, %135 : vector<1x128xf32>
    %168 = arith.addf %165, %167 : vector<1x128xf32>
    %cst_14 = arith.constant 0.000000e+00 : f32
    %169 = vector.broadcast %cst_14 : f32 to vector<1x128xf32>
    %170 = arith.subf %169, %141 : vector<1x128xf32>
    %171 = arith.mulf %170, %144 : vector<1x128xf32>
    %172 = arith.mulf %144, %132 : vector<1x128xf32>
    %173 = arith.mulf %144, %135 : vector<1x128xf32>
    %174 = arith.mulf %101, %151 : vector<1x128xf32>
    %175 = arith.mulf %107, %157 : vector<1x128xf32>
    %176 = arith.addf %174, %175 : vector<1x128xf32>
    %177 = arith.mulf %108, %158 : vector<1x128xf32>
    %178 = arith.addf %176, %177 : vector<1x128xf32>
    %179 = arith.mulf %112, %162 : vector<1x128xf32>
    %180 = arith.addf %178, %179 : vector<1x128xf32>
    %181 = arith.mulf %118, %168 : vector<1x128xf32>
    %182 = arith.addf %180, %181 : vector<1x128xf32>
    %183 = arith.mulf %121, %171 : vector<1x128xf32>
    %184 = arith.addf %182, %183 : vector<1x128xf32>
    %185 = arith.mulf %122, %172 : vector<1x128xf32>
    %186 = arith.addf %184, %185 : vector<1x128xf32>
    %187 = arith.mulf %123, %173 : vector<1x128xf32>
    %188 = arith.addf %186, %187 : vector<1x128xf32>
    %189 = arith.mulf %97, %147 : vector<1x128xf32>
    %190 = arith.addf %188, %189 : vector<1x128xf32>
    %cst_15 = arith.constant 1.000000e+00 : f32
    %191 = vector.broadcast %cst_15 : f32 to vector<1x128xf32>
    %192 = arith.subf %190, %191 : vector<1x128xf32>
    %cst_16 = arith.constant 5.000000e-01 : f32
    %193 = vector.broadcast %cst_16 : f32 to vector<1x128xf32>
    %194 = arith.mulf %192, %193 : vector<1x128xf32>
    %cst_17 = arith.constant -1.000000e+00 : f32
    %cst_18 = arith.constant 1.000000e+00 : f32
    %195 = vector.broadcast %cst_17 : f32 to vector<1x128xf32>
    %196 = arith.maximumf %195, %194 : vector<1x128xf32>
    %197 = vector.broadcast %cst_18 : f32 to vector<1x128xf32>
    %198 = arith.minimumf %197, %196 : vector<1x128xf32>
    %199 = vector.extract_strided_slice %0 {offsets = [12, 0], sizes = [3, 128], strides = [1, 1]} : vector<24x128xf32> to vector<3x128xf32>
    %200 = vector.extract_strided_slice %0 {offsets = [15, 0], sizes = [3, 128], strides = [1, 1]} : vector<24x128xf32> to vector<3x128xf32>
    %201 = arith.subf %199, %200 : vector<3x128xf32>
    %202 = arith.mulf %201, %201 : vector<3x128xf32>
    %203 = vector.shape_cast %202 : vector<3x128xf32> to vector<1x3x128xf32>
    %cst_19 = arith.constant dense<0.000000e+00> : vector<1xf32>
    %204 = vector.multi_reduction <add>, %203, %cst_19 [1, 2] : vector<1x3x128xf32> to vector<1xf32>
    %205 = vector.shape_cast %204 : vector<1xf32> to vector<1x1x1xf32>
    %206 = vector.extract %205[0, 0, 0] : f32 from vector<1x1x1xf32>
    %cst_20 = arith.constant 2.400000e+01 : f32
    %207 = arith.divf %206, %cst_20 : f32
    %208 = vector.extract_strided_slice %0 {offsets = [18, 0], sizes = [3, 128], strides = [1, 1]} : vector<24x128xf32> to vector<3x128xf32>
    %209 = vector.extract_strided_slice %0 {offsets = [21, 0], sizes = [3, 128], strides = [1, 1]} : vector<24x128xf32> to vector<3x128xf32>
    %210 = vector.extract_strided_slice %209 {offsets = [0, 0], sizes = [1, 128], strides = [1, 1]} : vector<3x128xf32> to vector<1x128xf32>
    %211 = vector.extract_strided_slice %209 {offsets = [1, 0], sizes = [1, 128], strides = [1, 1]} : vector<3x128xf32> to vector<1x128xf32>
    %212 = arith.mulf %210, %211 : vector<1x128xf32>
    %213 = vector.extract_strided_slice %208 {offsets = [0, 0], sizes = [1, 128], strides = [1, 1]} : vector<3x128xf32> to vector<1x128xf32>
    %214 = vector.extract_strided_slice %208 {offsets = [1, 0], sizes = [1, 128], strides = [1, 1]} : vector<3x128xf32> to vector<1x128xf32>
    %215 = arith.mulf %213, %214 : vector<1x128xf32>
    %216 = arith.subf %212, %215 : vector<1x128xf32>
    %217 = vector.extract_strided_slice %209 {offsets = [0, 0], sizes = [1, 128], strides = [1, 1]} : vector<3x128xf32> to vector<1x128xf32>
    %218 = vector.extract_strided_slice %209 {offsets = [2, 0], sizes = [1, 128], strides = [1, 1]} : vector<3x128xf32> to vector<1x128xf32>
    %219 = arith.mulf %217, %218 : vector<1x128xf32>
    %220 = vector.extract_strided_slice %208 {offsets = [0, 0], sizes = [1, 128], strides = [1, 1]} : vector<3x128xf32> to vector<1x128xf32>
    %221 = vector.extract_strided_slice %208 {offsets = [2, 0], sizes = [1, 128], strides = [1, 1]} : vector<3x128xf32> to vector<1x128xf32>
    %222 = arith.mulf %220, %221 : vector<1x128xf32>
    %223 = arith.subf %219, %222 : vector<1x128xf32>
    %224 = arith.mulf %216, %216 : vector<1x128xf32>
    %225 = arith.mulf %223, %223 : vector<1x128xf32>
    %226 = arith.addf %224, %225 : vector<1x128xf32>
    %227 = math.sqrt %226 : vector<1x128xf32>
    %cst_21 = arith.constant 1.000000e+02 : f32
    %228 = vector.broadcast %cst_21 : f32 to vector<1x128xf32>
    %229 = arith.mulf %227, %228 : vector<1x128xf32>
    %c0_22 = arith.constant 0 : index
    %c0_23 = arith.constant 0 : index
    %230 = vector.load %arg1[%c0_22, %c0_23] : memref<2x256xf32, #tpu.memory_space<vmem>>, vector<2x256xf32>
    %231 = vector.extract_strided_slice %230 {offsets = [0, 0], sizes = [1, 256], strides = [1, 1]} : vector<2x256xf32> to vector<1x256xf32>
    %232 = vector.extract_strided_slice %230 {offsets = [1, 0], sizes = [1, 256], strides = [1, 1]} : vector<2x256xf32> to vector<1x256xf32>
    %233 = arith.subf %231, %232 : vector<1x256xf32>
    %234 = arith.mulf %233, %233 : vector<1x256xf32>
    %235 = vector.shape_cast %234 : vector<1x256xf32> to vector<1x1x256xf32>
    %cst_24 = arith.constant dense<0.000000e+00> : vector<1xf32>
    %236 = vector.multi_reduction <add>, %235, %cst_24 [1, 2] : vector<1x1x256xf32> to vector<1xf32>
    %237 = vector.shape_cast %236 : vector<1xf32> to vector<1x1x1xf32>
    %238 = vector.extract %237[0, 0, 0] : f32 from vector<1x1x1xf32>
    %cst_25 = arith.constant 2.560000e+02 : f32
    %239 = arith.divf %238, %cst_25 : f32
    %240 = tpu.iota {dimensions = array<i32: 1>} : vector<1x128xi32>
    %cst_26 = arith.constant 0.000000e+00 : f32
    %241 = vector.broadcast %cst_26 : f32 to vector<1x128xf32>
    %c0_i32 = arith.constant 0 : i32
    %242 = vector.broadcast %c0_i32 : i32 to vector<1x128xi32>
    %243 = arith.cmpi eq, %240, %242 : vector<1x128xi32>
    %244 = vector.broadcast %73 : f32 to vector<1x128xf32>
    %245 = arith.select %243, %244, %241 : vector<1x128xi1>, vector<1x128xf32>
    %c1_i32 = arith.constant 1 : i32
    %246 = vector.broadcast %c1_i32 : i32 to vector<1x128xi32>
    %247 = arith.cmpi eq, %240, %246 : vector<1x128xi32>
    %248 = vector.broadcast %207 : f32 to vector<1x128xf32>
    %249 = arith.select %247, %248, %245 : vector<1x128xi1>, vector<1x128xf32>
    %c2_i32 = arith.constant 2 : i32
    %250 = vector.broadcast %c2_i32 : i32 to vector<1x128xi32>
    %251 = arith.cmpi eq, %240, %250 : vector<1x128xi32>
    %252 = vector.broadcast %239 : f32 to vector<1x128xf32>
    %253 = arith.select %251, %252, %249 : vector<1x128xi1>, vector<1x128xf32>
    %c0_27 = arith.constant 0 : index
    %c0_28 = arith.constant 0 : index
    %254 = vector.load %arg2[%c0_27, %c0_28] : memref<3x128xf32, #tpu.memory_space<vmem>>, vector<1x128xf32>
    tpu.vector_store %arg2[%c0_27, %c0_28], %253 {strides = array<i32>} : memref<3x128xf32, #tpu.memory_space<vmem>>, vector<1x128xf32>,
    %c1 = arith.constant 1 : index
    %c0_29 = arith.constant 0 : index
    %255 = vector.load %arg2[%c1, %c0_29] : memref<3x128xf32, #tpu.memory_space<vmem>>, vector<1x128xf32>
    tpu.vector_store %arg2[%c1, %c0_29], %198 {strides = array<i32>} : memref<3x128xf32, #tpu.memory_space<vmem>>, vector<1x128xf32>,
    %c2 = arith.constant 2 : index
    %c0_30 = arith.constant 0 : index
    %256 = vector.load %arg2[%c2, %c0_30] : memref<3x128xf32, #tpu.memory_space<vmem>>, vector<1x128xf32>
    tpu.vector_store %arg2[%c2, %c0_30], %229 {strides = array<i32>} : memref<3x128xf32, #tpu.memory_space<vmem>>, vector<1x128xf32>,
    return
  }
}

</mosaic_0001>

<llo_original>
// kernel: fn.2
$region0: #{fn.2}
  #allocation0 [shape = 'u32[]', space=smem, size = 0x4, offset = 0x4, fixed_abs, tag = 'smem constant byte address 0x4 - core index']
  #allocation1 [shape = 'u32[144,128]{1,0:T(1,128)}', space=vmem, size = 0x12000, scoped, tag = 'internal scratch']
  #allocation2 [shape = 'u32[2048]{0}', space=vmem, size = 0x2000, scoped, tag = 'scoped memory for fn.2']
  #allocation3 [shape = 'u32[2048]{0}', space=vmem, size = 0x2000, scoped, tag = 'scoped memory for fn.2']
  #allocation4 [shape = 'u32[2048]{0}', space=vmem, size = 0x2000, scoped, tag = 'scoped memory for fn.2']
  #allocation5 [shape = 'u32[2048]{0}', space=vmem, size = 0x2000, scoped, tag = 'scoped memory for fn.2']
  #allocation6 [shape = 'u32[2048]{0}', space=vmem, size = 0x2000, scoped, tag = 'scoped memory for fn.2']
  #allocation7 [shape = 'u32[2048]{0}', space=vmem, size = 0x2000, scoped, tag = 'scoped memory for fn.2']
  #allocation8 [shape = 'u32[2048]{0}', space=vmem, size = 0x2000, scoped, tag = 'scoped memory for fn.2']
  #allocation9 [shape = 'u32[2048]{0}', space=vmem, size = 0x2000, scoped, tag = 'scoped memory for fn.2']
  #allocation10 [shape = 'u32[2048]{0}', space=vmem, size = 0x2000, scoped, tag = 'scoped memory for fn.2']
  #allocation11 [shape = 'u32[2048]{0}', space=vmem, size = 0x2000, scoped, tag = 'scoped memory for fn.2']
  #allocation12 [shape = 'u32[2048]{0}', space=vmem, size = 0x2000, scoped, tag = 'scoped memory for fn.2']
  #allocation13 [shape = 'u32[2048]{0}', space=vmem, size = 0x2000, scoped, tag = 'scoped memory for fn.2']
  #allocation14 [shape = 'u32[2048]{0}', space=vmem, size = 0x2000, scoped, tag = 'scoped memory for fn.2']
  #allocation15 [shape = 'u32[2048]{0}', space=vmem, size = 0x2000, scoped, tag = 'scoped memory for fn.2']
  #allocation16 [shape = 'u32[2048]{0}', space=vmem, size = 0x2000, scoped, tag = 'scoped memory for fn.2']
  #allocation17 [shape = 'u32[2048]{0}', space=vmem, size = 0x2000, scoped, tag = 'scoped memory for fn.2']
  #allocation18 [shape = 'u32[2048]{0}', space=vmem, size = 0x2000, scoped, tag = 'scoped memory for fn.2']
  #allocation19 [shape = 'u32[2048]{0}', space=vmem, size = 0x2000, scoped, tag = 'scoped memory for fn.2']
  #allocation20 [shape = 'u32[2048]{0}', space=vmem, size = 0x2000, scoped, tag = 'scoped memory for fn.2']
  #allocation21 [shape = 'u32[2048]{0}', space=vmem, size = 0x2000, scoped, tag = 'scoped memory for fn.2']
  #allocation22 [shape = 'u32[2048]{0}', space=vmem, size = 0x2000, scoped, tag = 'scoped memory for fn.2']
  #allocation23 [shape = 'u32[2048]{0}', space=vmem, size = 0x2000, scoped, tag = 'scoped memory for fn.2']
  #allocation24 [shape = 'u32[2048]{0}', space=vmem, size = 0x2000, scoped, tag = 'scoped memory for fn.2']
  #allocation25 [shape = 'u32[2048]{0}', space=vmem, size = 0x2000, scoped, tag = 'scoped memory for fn.2']
  #allocation26 [shape = 'u32[2048]{0}', space=vmem, size = 0x2000, scoped, tag = 'scoped memory for fn.2']
  #allocation27 [shape = 'u32[2048]{0}', space=vmem, size = 0x2000, scoped, tag = 'scoped memory for fn.2']
  #allocation28 [shape = 'u32[2048]{0}', space=vmem, size = 0x2000, scoped, tag = 'scoped memory for fn.2']
  #allocation29 [shape = 'u32[2048]{0}', space=vmem, size = 0x2000, scoped, tag = 'scoped memory for fn.2']
  #allocation30 [shape = 'u32[2048]{0}', space=vmem, size = 0x2000, scoped, tag = 'scoped memory for fn.2']
  #allocation31 [shape = 'u32[2048]{0}', space=vmem, size = 0x2000, scoped, tag = 'scoped memory for fn.2']
  %s0 = inlined_call_operand.vmem [shape: f32[6,128], index: 0, kind: input, shape index: {}]
  %s1 = inlined_call_operand.<no memory space> [shape: f32[], index: 1, kind: input, shape index: {}]
  %s2 = inlined_call_operand.vmem [shape: f32[6,128], index: 2, kind: input, shape index: {}]
  %s3 = inlined_call_operand.vmem [shape: f32[6,128], index: 3, kind: input, shape index: {}]
  %s4 = inlined_call_operand.vmem [shape: f32[6,128], index: 4, kind: input, shape index: {}]
  %s5 = inlined_call_operand.vmem [shape: f32[1,256], index: 5, kind: input, shape index: {}]
  %s6 = inlined_call_operand.vmem [shape: f32[1,256], index: 6, kind: input, shape index: {}]
  %s7 = inlined_call_operand.vmem [shape: f32[3,128], index: 7, kind: output, shape index: {}]
  %s8 = sld [smem:[#allocation0]]
  $region34: #{fn.2} parent=0
    _
  %s10 = ssub.s32 1, %s8
  %s11 = scalar_select 0, %s10, %s8
  %v12 = vstv %s1
  %v13 = vstv %s1
  %v14 = vstv %s1
  %v15 = vstv %s1
  %v16 = vstv %s1
  %v17 = vstv %s1
  $region1: #{fn.2} parent=0
    #allocation32 [shape = 'u8[12288]{0}', space=vmem, size = 0x3000, dematerialized = true, scoped, tag = 'FusionAdapter Buffer %fusion.1 = f32[24,128]{1,0:T(8,128)} fusion(%param_0.38, %param_1.39, %param_2.27, %param_3.32, %param_4.35), kind=kLoop, calls=%fused_computation.1.clone, metadata={op_name="jit(fn)/concatenate" stack_frame_id=37}']
    #allocation33 [shape = 'u8[2048]{0}', space=vmem, size = 0x800, dematerialized = true, scoped, tag = 'FusionAdapter Buffer %fusion.8 = f32[2,256]{1,0:T(2,128)} fusion(%param_5.8, %param_1.39, %param_6.2), kind=kLoop, calls=%fused_computation.13.clone, metadata={op_name="jit(fn)/concatenate" stack_frame_id=35}']
    // Predicated region
    $region2: #{fn.2} parent=1 // pred_check
      _
    $region3: #{fn.2} parent=1 // pred_check_branch
      %19 = sbr.rel (0) target = $region5
    $region4: #{fn.2} parent=1 // pred_region
      %s21 = ssub.s32 1, 0
      %s22 = smul.u32 128, %s21
      %p23 = scmp.lt.s32.totalorder 0, 0
      %s24 = scalar_select %p23, 0, 0
      %s25 = smul.addr %s24, 8
      %s26 = scalar_lea.vmem %s0, %s25
      %s28 = ssub.s32 1, 0
      %s29 = smul.u32 128, %s28
    $region5: #{fn.2} parent=1 // pred_fallthru
      _
    // Predicated region
    $region6: #{fn.2} parent=1 // pred_check
      _
    $region7: #{fn.2} parent=1 // pred_check_branch
      %31 = sbr.rel (0) target = $region9
    $region8: #{fn.2} parent=1 // pred_region
      %s33 = ssub.s32 1, 0
      %s34 = smul.u32 128, %s33
      %p35 = scmp.lt.s32.totalorder 0, 0
      %s36 = scalar_select %p35, 0, 0
      %s37 = smul.addr %s36, 8
      %s38 = scalar_lea.vmem %s2, %s37
      %s40 = ssub.s32 1, 0
      %s41 = smul.u32 128, %s40
    $region9: #{fn.2} parent=1 // pred_fallthru
      _
    // Predicated region
    $region10: #{fn.2} parent=1 // pred_check
      _
    $region11: #{fn.2} parent=1 // pred_check_branch
      %43 = sbr.rel (0) target = $region13
    $region12: #{fn.2} parent=1 // pred_region
      %s45 = ssub.s32 1, 0
      %s46 = smul.u32 128, %s45
      %p47 = scmp.lt.s32.totalorder 0, 0
      %s48 = scalar_select %p47, 0, 0
      %s49 = smul.addr %s48, 8
      %s50 = scalar_lea.vmem %s3, %s49
      %s52 = ssub.s32 1, 0
      %s53 = smul.u32 128, %s52
    $region13: #{fn.2} parent=1 // pred_fallthru
      _
    // Predicated region
    $region14: #{fn.2} parent=1 // pred_check
      _
    $region15: #{fn.2} parent=1 // pred_check_branch
      %55 = sbr.rel (0) target = $region17
    $region16: #{fn.2} parent=1 // pred_region
      _
    $region17: #{fn.2} parent=1 // pred_fallthru
      _
    // Predicated region
    $region18: #{fn.2} parent=1 // pred_check
      _
    $region19: #{fn.2} parent=1 // pred_check_branch
      %57 = sbr.rel (0) target = $region21
    $region20: #{fn.2} parent=1 // pred_region
      %s59 = ssub.s32 1, 0
      %s60 = smul.u32 16, %s59
      %s61 = smul.u32 %s60, 2
      %p62 = scmp.lt.s32.totalorder 0, 0
      %s63 = scalar_select %p62, 0, 0
      %s64 = smul.addr %s63, 2
      %s65 = scalar_lea.vmem %s5, %s64
      %s67 = ssub.s32 1, 0
      %s68 = smul.u32 16, %s67
      %s69 = smul.u32 %s68, 2
    $region21: #{fn.2} parent=1 // pred_fallthru
      _
    // Predicated region
    $region22: #{fn.2} parent=1 // pred_check
      _
    $region23: #{fn.2} parent=1 // pred_check_branch
      %71 = sbr.rel (0) target = $region25
    $region24: #{fn.2} parent=1 // pred_region
      _
    $region25: #{fn.2} parent=1 // pred_fallthru
      _
    %s73 = ssub.s32 1, 0
    %s74 = smul.u32 128, %s73
    %p75 = scmp.lt.s32.totalorder 0, 0
    %s76 = scalar_select %p75, 0, 0
    %s77 = smul.addr %s76, 8
    %s78 = scalar_lea.vmem %s0, %s77
    %s80 = ssub.s32 1, 0
    %s81 = smul.u32 128, %s80
    %p82 = scmp.lt.s32.totalorder 0, 0
    %s83 = scalar_select %p82, 0, 0
    %s84 = smul.addr %s83, 8
    %s85 = scalar_lea.vmem %s2, %s84
    %s87 = ssub.s32 1, 0
    %s88 = smul.u32 128, %s87
    %p89 = scmp.lt.s32.totalorder 0, 0
    %s90 = scalar_select %p89, 0, 0
    %s91 = smul.addr %s90, 8
    %s92 = scalar_lea.vmem %s3, %s91
    %s94 = ssub.s32 1, 0
    %s95 = smul.u32 16, %s94
    %s96 = smul.u32 %s95, 2
    %p97 = scmp.lt.s32.totalorder 0, 0
    %s98 = scalar_select %p97, 0, 0
    %s99 = smul.addr %s98, 2
    %s100 = scalar_lea.vmem %s5, %s99
    %s102 = ssub.s32 1, 0
    %s103 = smul.u32 128, %s102
    %p104 = scmp.lt.s32.totalorder 0, 0
    %s105 = scalar_select %p104, 0, 0
    %s106 = smul.addr %s105, 8
    %s107 = scalar_lea.vmem %s0, %s106
    %s109 = ssub.s32 1, 0
    %s110 = smul.u32 128, %s109
    %s112 = ssub.s32 1, 0
    %s113 = smul.u32 128, %s112
    %p114 = scmp.lt.s32.totalorder 0, 0
    %s115 = scalar_select %p114, 0, 0
    %s116 = smul.addr %s115, 8
    %s117 = scalar_lea.vmem %s2, %s116
    %s119 = ssub.s32 1, 0
    %s120 = smul.u32 128, %s119
    %s122 = ssub.s32 1, 0
    %s123 = smul.u32 128, %s122
    %p124 = scmp.lt.s32.totalorder 0, 0
    %s125 = scalar_select %p124, 0, 0
    %s126 = smul.addr %s125, 8
    %s127 = scalar_lea.vmem %s3, %s126
    %s129 = ssub.s32 1, 0
    %s130 = smul.u32 128, %s129
    %s132 = ssub.s32 1, 0
    %s133 = smul.u32 16, %s132
    %s134 = smul.u32 %s133, 2
    %p135 = scmp.lt.s32.totalorder 0, 0
    %s136 = scalar_select %p135, 0, 0
    %s137 = smul.addr %s136, 2
    %s138 = scalar_lea.vmem %s5, %s137
    %s140 = ssub.s32 1, 0
    %s141 = smul.u32 16, %s140
    %s142 = smul.u32 %s141, 2
    %s143 = ssub.s32 0, 0
    %p144 = scmp.lt.s32.totalorder %s143, 0
    %s145 = scalar_select %p144, 0, 255
    %s146 = sand.u32 63, %s145
    %v147 = vld [vmem:[%s107] sm:%s146]
    %s148 = ssub.s32 0, 0
    %p149 = scmp.lt.s32.totalorder %s148, 0
    %s150 = scalar_select %p149, 0, 255
    %s151 = sand.u32 63, %s150
    %v152 = vld [vmem:[%s117] sm:%s151]
    %s153 = ssub.s32 0, 0
    %p154 = scmp.lt.s32.totalorder %s153, 0
    %s155 = scalar_select %p154, 0, 255
    %s156 = sand.u32 63, %s155
    %v157 = vld [vmem:[%s127] sm:%s156]
    %v158 = vlaneseq
    %v159 = vshrl.u32 %v158, 7
    %v160 = vadd.s32 %v159, 8
    %vm161 = vcmp.lt.s32.totalorder %v160, 14
    %v162 = vsel %vm161, %v157, %v14
    %vm163 = vcmask 1041408
    %v164 = vsel %vm163, %v162, %v14
    %v165 = vrot.slane %v164, 2
    %v166 = vld [vmem:[%s4] sm:$0x3f]
    %v167 = vlaneseq
    %v168 = vshrl.u32 %v167, 7
    %vm170 = vcmp.lt.s32.totalorder %v168, 6
    %v171 = vsel %vm170, %v166, %v15
    %172 = xla_tuple %v171, %v165
    %173 = xla_tuple %172
    %v174 = vmax.f32 %v171, %v165
    %175 = xla_tuple %v174
    %176 = xla_tuple %v174, %v13
    %177 = xla_tuple %176
    %v178 = vmax.f32 %v174, %v13
    %179 = xla_tuple %v178
    %180 = xla_tuple %v178, %v12
    %181 = xla_tuple %180
    %v182 = vmax.f32 %v178, %v12
    %183 = xla_tuple %v182
    %185 = vst [vmem:[#allocation32] sm:$0xff] %v182
    %v186 = vlaneseq
    %v187 = vshrl.u32 %v186, 7
    %v188 = vadd.s32 %v187, 16
    %vm189 = vcmp.lt.s32.totalorder %v188, 22
    %v190 = vsel %vm189, %v152, %v13
    %vm191 = vcmask 1043456
    %v192 = vsel %vm191, %v190, %v13
    %v193 = vrot.slane %v192, 4
    %vm194 = vcmask 1041408
    %v195 = vsel %vm194, %v14, %v162
    %v196 = vrot.slane %v195, 2
    %197 = xla_tuple %v15, %v196
    %198 = xla_tuple %197
    %v199 = vmax.f32 %v15, %v196
    %200 = xla_tuple %v199
    %201 = xla_tuple %v199, %v193
    %202 = xla_tuple %201
    %v203 = vmax.f32 %v199, %v193
    %204 = xla_tuple %v203
    %205 = xla_tuple %v203, %v12
    %206 = xla_tuple %205
    %v207 = vmax.f32 %v203, %v12
    %208 = xla_tuple %v207
    %s209 = scalar_lea.vmem [#allocation32], 8
    %211 = vst [vmem:[%s209] sm:$0xff] %v207
    %v212 = vlaneseq
    %v213 = vshrl.u32 %v212, 7
    %v214 = vadd.s32 %v213, 24
    %vm215 = vcmp.lt.s32.totalorder %v214, 30
    %v216 = vsel %vm215, %v147, %v12
    %vm217 = vcmask 1045504
    %v218 = vsel %vm217, %v216, %v12
    %v219 = vrot.slane %v218, 6
    %vm220 = vcmask 1043456
    %v221 = vsel %vm220, %v13, %v190
    %v222 = vrot.slane %v221, 4
    %223 = xla_tuple %v15, %v14
    %224 = xla_tuple %223
    %v225 = vmax.f32 %v15, %v14
    %226 = xla_tuple %v225
    %227 = xla_tuple %v225, %v222
    %228 = xla_tuple %227
    %v229 = vmax.f32 %v225, %v222
    %230 = xla_tuple %v229
    %231 = xla_tuple %v229, %v219
    %232 = xla_tuple %231
    %v233 = vmax.f32 %v229, %v219
    %234 = xla_tuple %v233
    %s235 = scalar_lea.vmem [#allocation32], 16
    %237 = vst [vmem:[%s235] sm:$0xff] %v233
    %s238 = ssub.s32 0, 0
    %p239 = scmp.lt.s32.totalorder %s238, 0
    %s240 = scalar_select %p239, 0, 255
    %s241 = sand.u32 1, %s240
    %s242 = sand.u32 1, %s241
    %v243 = vld [vmem:[%s138] sm:%s242]
    %v244 = vlaneseq
    %v245 = vshrl.u32 %v244, 7
    %v246 = vadd.s32 %v245, 8
    %vm247 = vcmp.lt.s32.totalorder %v246, 9
    %v248 = vsel %vm247, %v243, %v16
    %vm249 = vcmask 1046528
    %v250 = vsel %vm249, %v248, %v16
    %v251 = vrot.slane %v250, 7
    %v252 = vld [vmem:[%s6] sm:$0x1]
    %v253 = vlaneseq
    %v254 = vshrl.u32 %v253, 7
    %vm256 = vcmp.lt.s32.totalorder %v254, 1
    %v257 = vsel %vm256, %v252, %v17
    %258 = xla_tuple %v257, %v251
    %259 = xla_tuple %258
    %v260 = vmax.f32 %v257, %v251
    %261 = xla_tuple %v260
    %263 = vst [vmem:[#allocation33] sm:$0x3] %v260
    %s264 = scalar_lea.vmem %s138, 1
    %s265 = ssub.s32 0, 0
    %p266 = scmp.lt.s32.totalorder %s265, 0
    %s267 = scalar_select %p266, 0, 255
    %s268 = sand.u32 1, %s267
    %s269 = sand.u32 1, %s268
    %v270 = vld [vmem:[%s264] sm:%s269]
    %s271 = scalar_lea.vmem %s138, 1
    %v272 = vlaneseq
    %v273 = vshrl.u32 %v272, 7
    %v274 = vadd.s32 %v273, 8
    %vm275 = vcmp.lt.s32.totalorder %v274, 9
    %v276 = vsel %vm275, %v270, %v16
    %vm277 = vcmask 1046528
    %v278 = vsel %vm277, %v276, %v16
    %v279 = vrot.slane %v278, 7
    %s280 = scalar_lea.vmem %s6, 1
    %v281 = vld [vmem:[%s280] sm:$0x1]
    %v282 = vlaneseq
    %v283 = vshrl.u32 %v282, 7
    %vm285 = vcmp.lt.s32.totalorder %v283, 1
    %v286 = vsel %vm285, %v281, %v17
    %287 = xla_tuple %v286, %v279
    %288 = xla_tuple %287
    %v289 = vmax.f32 %v286, %v279
    %290 = xla_tuple %v289
    %s291 = scalar_lea.vmem [#allocation33], 2
    %293 = vst [vmem:[%s291] sm:$0x3] %v289
    %v294 = vld [vmem:[#allocation32] sm:$0xff]
    %v295 = vld [vmem:[#allocation32 + $0x8] sm:$0xff]
    %v296 = vld [vmem:[#allocation32 + $0x10] sm:$0xff]
    %v297 = vmul.f32 %v294, 1.5707964
    %v298 = vmul.f32 %v295, 1.5707964
    %v299 = vand.u32 2147483647, %v297
    %vm300 = vcmp.le.f32.partialorder %v299, 0.7853982
    %vm301 = vcmp.lt.s32.totalorder %v297, 0
    %v302 = vand.u32 %v297, 2139095040
    %v303 = vshrl.u32 %v302, 23
    %v304 = vsub.s32 %v303, 127
    %v305 = vand.u32 2147483647, %v297
    %v306 = vand.u32 %v305, 8388607
    %v307 = vor.u32 %v306, 8388608
    %v308 = vsub.s32 0, %v307
    %v309 = vadd.s32 %v304, 1
    %vm310 = vcmp.gt.s32.totalorder %v309, 0
    %v311 = vsel %vm310, %v309, 0
    %v312 = vshrl.u32 %v311, 5
    %v313 = vand.u32 %v311, 31
    %v314 = vsub.s32 32, %v313
    %v315 = vshrl.u32 683565275, %v314
    %v316 = vshll.u32 683565275, %v313
    %v317 = vshrl.u32 2475754826, %v314
    %v318 = vor.u32 %v316, %v317
    %v319 = vshll.u32 2475754826, %v313
    %v320 = vshrl.u32 2131351028, %v314
    %v321 = vor.u32 %v319, %v320
    %v322 = vshll.u32 2131351028, %v313
    %v323 = vshrl.u32 2102212464, %v314
    %v324 = vor.u32 %v322, %v323
    %v325 = vshll.u32 2102212464, %v313
    %v326 = vshrl.u32 920167782, %v314
    %v327 = vor.u32 %v325, %v326
    %v328 = vshll.u32 920167782, %v313
    %v329 = vshrl.u32 1326507024, %v314
    %v330 = vor.u32 %v328, %v329
    %vm331 = vcmp.lt.s32.totalorder %v312, 1
    %vm332 = vcmp.lt.s32.totalorder %v312, 2
    %vm333 = vcmp.lt.s32.totalorder %v312, 3
    %vm334 = vcmp.lt.s32.totalorder %v312, 4
    %v335 = vsel %vm331, %v315, %v318
    %v336 = vsel %vm334, %v324, 2102212464
    %v337 = vsel %vm333, %v321, %v336
    %v338 = vsel %vm332, %v335, %v337
    %v339 = vsel %vm331, %v318, %v321
    %v340 = vsel %vm334, %v327, 920167782
    %v341 = vsel %vm333, %v324, %v340
    %v342 = vsel %vm332, %v339, %v341
    %v343 = vsel %vm331, %v321, %v324
    %v344 = vsel %vm334, %v330, 1326507024
    %v345 = vsel %vm333, %v327, %v344
    %v346 = vsel %vm332, %v343, %v345
    %v347 = vshll.u32 %v307, 8
    %v348 = vmul.u32.u64.compose %v347, %v346
    %v349 = vextract.low.u32 %v348
    %v350 = vextract.high.u32 %v348
    %v351 = vmul.u32.u64.compose %v347, %v342
    %v352 = vextract.low.u32 %v351
    %v353 = vextract.high.u32 %v351
    %v354 = vmul.u32 %v347, %v338
    %v355 = vadd.s32 %v350, %v352
    %vm356 = vc.u32 %v350, %v352
    %v357 = vadd.s32 %v353, 1
    %v358 = vsel %vm356, %v357, %v353
    %v359 = vadd.s32 %v354, %v358
    %v360 = vadd.s32 %v359, 536870912
    %v361 = vshrl.u32 %v360, 30
    %v362 = vshll.u32 %v361, 30
    %v363 = vsub.s32 %v359, %v362
    %vm364 = vcmp.lt.s32.totalorder %v363, 0
    %v365 = vsub.s32 0, %v363
    %v366 = vsel %vm364, %v365, %v363
    %v367 = vclz %v366
    %v368 = vsub.s32 %v367, 2
    %vm369 = vcmp.gt.s32.totalorder 0, %v368
    %v370 = vsel %vm369, 0, %v368
    %v371 = vsub.s32 32, %v370
    %v372 = vshll.u32 %v363, %v370
    %v373 = vshrl.u32 %v355, %v371
    %v374 = vor.u32 %v372, %v373
    %v375 = vsub.s32 4294967266, %v370
    %v376 = vadd.s32 %v375, 127
    %v377 = vshll.u32 %v376, 23
    %v378 = vor.u32 4788187, %v377
    %v379 = vand.u32 2147483647, %v378
    %v381 = vcvt.s32.f32 %v374
    %v382 = vmul.f32 %v381, %v379
    %v383 = vxor.u32 %v382, 2147483648
    %v384 = vsel %vm301, %v383, %v382
    %v385 = vsub.s32 4, %v361
    %v386 = vsel %vm301, %v385, %v361
    %v387 = vsel %vm300, %v297, %v384
    %v388 = vsel %vm300, 0, %v386
    %v389 = vcosq.f32.pop %v387
    %v390 = vsinq.f32.pop %v387
    %vm391 = vweird.f32 %v297
    %v392 = vadd.s32 %v388, 3
    %v393 = vand.u32 %v392, 3
    %vm394 = vcmp.lt.s32.totalorder %v393, 2
    %vm395 = vcmp.eq.s32.totalorder %v393, 0
    %v396 = vxor.u32 %v390, 2147483648
    %v397 = vsel %vm395, %v389, %v396
    %vm398 = vcmp.eq.s32.totalorder %v393, 2
    %v399 = vxor.u32 %v389, 2147483648
    %v400 = vsel %vm398, %v399, %v390
    %v401 = vsel %vm394, %v397, %v400
    %v402 = vsel %vm391, nan, %v401
    %v403 = vand.u32 2147483647, %v298
    %vm404 = vcmp.le.f32.partialorder %v403, 0.7853982
    %vm405 = vcmp.lt.s32.totalorder %v298, 0
    %v406 = vand.u32 %v298, 2139095040
    %v407 = vshrl.u32 %v406, 23
    %v408 = vsub.s32 %v407, 127
    %v409 = vand.u32 2147483647, %v298
    %v410 = vand.u32 %v409, 8388607
    %v411 = vor.u32 %v410, 8388608
    %v412 = vsub.s32 0, %v411
    %v413 = vadd.s32 %v408, 1
    %vm414 = vcmp.gt.s32.totalorder %v413, 0
    %v415 = vsel %vm414, %v413, 0
    %v416 = vshrl.u32 %v415, 5
    %v417 = vand.u32 %v415, 31
    %v418 = vsub.s32 32, %v417
    %v419 = vshrl.u32 683565275, %v418
    %v420 = vshll.u32 683565275, %v417
    %v421 = vshrl.u32 2475754826, %v418
    %v422 = vor.u32 %v420, %v421
    %v423 = vshll.u32 2475754826, %v417
    %v424 = vshrl.u32 2131351028, %v418
    %v425 = vor.u32 %v423, %v424
    %v426 = vshll.u32 2131351028, %v417
    %v427 = vshrl.u32 2102212464, %v418
    %v428 = vor.u32 %v426, %v427
    %v429 = vshll.u32 2102212464, %v417
    %v430 = vshrl.u32 920167782, %v418
    %v431 = vor.u32 %v429, %v430
    %v432 = vshll.u32 920167782, %v417
    %v433 = vshrl.u32 1326507024, %v418
    %v434 = vor.u32 %v432, %v433
    %vm435 = vcmp.lt.s32.totalorder %v416, 1
    %vm436 = vcmp.lt.s32.totalorder %v416, 2
    %vm437 = vcmp.lt.s32.totalorder %v416, 3
    %vm438 = vcmp.lt.s32.totalorder %v416, 4
    %v439 = vsel %vm435, %v419, %v422
    %v440 = vsel %vm438, %v428, 2102212464
    %v441 = vsel %vm437, %v425, %v440
    %v442 = vsel %vm436, %v439, %v441
    %v443 = vsel %vm435, %v422, %v425
    %v444 = vsel %vm438, %v431, 920167782
    %v445 = vsel %vm437, %v428, %v444
    %v446 = vsel %vm436, %v443, %v445
    %v447 = vsel %vm435, %v425, %v428
    %v448 = vsel %vm438, %v434, 1326507024
    %v449 = vsel %vm437, %v431, %v448
    %v450 = vsel %vm436, %v447, %v449
    %v451 = vshll.u32 %v411, 8
    %v452 = vmul.u32.u64.compose %v451, %v450
    %v453 = vextract.low.u32 %v452
    %v454 = vextract.high.u32 %v452
    %v455 = vmul.u32.u64.compose %v451, %v446
    %v456 = vextract.low.u32 %v455
    %v457 = vextract.high.u32 %v455
    %v458 = vmul.u32 %v451, %v442
    %v459 = vadd.s32 %v454, %v456
    %vm460 = vc.u32 %v454, %v456
    %v461 = vadd.s32 %v457, 1
    %v462 = vsel %vm460, %v461, %v457
    %v463 = vadd.s32 %v458, %v462
    %v464 = vadd.s32 %v463, 536870912
    %v465 = vshrl.u32 %v464, 30
    %v466 = vshll.u32 %v465, 30
    %v467 = vsub.s32 %v463, %v466
    %vm468 = vcmp.lt.s32.totalorder %v467, 0
    %v469 = vsub.s32 0, %v467
    %v470 = vsel %vm468, %v469, %v467
    %v471 = vclz %v470
    %v472 = vsub.s32 %v471, 2
    %vm473 = vcmp.gt.s32.totalorder 0, %v472
    %v474 = vsel %vm473, 0, %v472
    %v475 = vsub.s32 32, %v474
    %v476 = vshll.u32 %v467, %v474
    %v477 = vshrl.u32 %v459, %v475
    %v478 = vor.u32 %v476, %v477
    %v479 = vsub.s32 4294967266, %v474
    %v480 = vadd.s32 %v479, 127
    %v481 = vshll.u32 %v480, 23
    %v482 = vor.u32 4788187, %v481
    %v483 = vand.u32 2147483647, %v482
    %v485 = vcvt.s32.f32 %v478
    %v486 = vmul.f32 %v485, %v483
    %v487 = vxor.u32 %v486, 2147483648
    %v488 = vsel %vm405, %v487, %v486
    %v489 = vsub.s32 4, %v465
    %v490 = vsel %vm405, %v489, %v465
    %v491 = vsel %vm404, %v298, %v488
    %v492 = vsel %vm404, 0, %v490
    %v493 = vcosq.f32.pop %v491
    %v494 = vsinq.f32.pop %v491
    %vm495 = vweird.f32 %v298
    %v496 = vadd.s32 %v492, 3
    %v497 = vand.u32 %v496, 3
    %vm498 = vcmp.lt.s32.totalorder %v497, 2
    %vm499 = vcmp.eq.s32.totalorder %v497, 0
    %v500 = vxor.u32 %v494, 2147483648
    %v501 = vsel %vm499, %v493, %v500
    %vm502 = vcmp.eq.s32.totalorder %v497, 2
    %v503 = vxor.u32 %v493, 2147483648
    %v504 = vsel %vm502, %v503, %v494
    %v505 = vsel %vm498, %v501, %v504
    %v506 = vsel %vm495, nan, %v505
    %v507 = vand.u32 2147483647, %v297
    %vm508 = vcmp.le.f32.partialorder %v507, 0.7853982
    %vm509 = vcmp.lt.s32.totalorder %v297, 0
    %v510 = vand.u32 %v297, 2139095040
    %v511 = vshrl.u32 %v510, 23
    %v512 = vsub.s32 %v511, 127
    %v513 = vand.u32 2147483647, %v297
    %v514 = vand.u32 %v513, 8388607
    %v515 = vor.u32 %v514, 8388608
    %v516 = vsub.s32 0, %v515
    %v517 = vadd.s32 %v512, 1
    %vm518 = vcmp.gt.s32.totalorder %v517, 0
    %v519 = vsel %vm518, %v517, 0
    %v520 = vshrl.u32 %v519, 5
    %v521 = vand.u32 %v519, 31
    %v522 = vsub.s32 32, %v521
    %v523 = vshrl.u32 683565275, %v522
    %v524 = vshll.u32 683565275, %v521
    %v525 = vshrl.u32 2475754826, %v522
    %v526 = vor.u32 %v524, %v525
    %v527 = vshll.u32 2475754826, %v521
    %v528 = vshrl.u32 2131351028, %v522
    %v529 = vor.u32 %v527, %v528
    %v530 = vshll.u32 2131351028, %v521
    %v531 = vshrl.u32 2102212464, %v522
    %v532 = vor.u32 %v530, %v531
    %v533 = vshll.u32 2102212464, %v521
    %v534 = vshrl.u32 920167782, %v522
    %v535 = vor.u32 %v533, %v534
    %v536 = vshll.u32 920167782, %v521
    %v537 = vshrl.u32 1326507024, %v522
    %v538 = vor.u32 %v536, %v537
    %vm539 = vcmp.lt.s32.totalorder %v520, 1
    %vm540 = vcmp.lt.s32.totalorder %v520, 2
    %vm541 = vcmp.lt.s32.totalorder %v520, 3
    %vm542 = vcmp.lt.s32.totalorder %v520, 4
    %v543 = vsel %vm539, %v523, %v526
    %v544 = vsel %vm542, %v532, 2102212464
    %v545 = vsel %vm541, %v529, %v544
    %v546 = vsel %vm540, %v543, %v545
    %v547 = vsel %vm539, %v526, %v529
    %v548 = vsel %vm542, %v535, 920167782
    %v549 = vsel %vm541, %v532, %v548
    %v550 = vsel %vm540, %v547, %v549
    %v551 = vsel %vm539, %v529, %v532
    %v552 = vsel %vm542, %v538, 1326507024
    %v553 = vsel %vm541, %v535, %v552
    %v554 = vsel %vm540, %v551, %v553
    %v555 = vshll.u32 %v515, 8
    %v556 = vmul.u32.u64.compose %v555, %v554
    %v557 = vextract.low.u32 %v556
    %v558 = vextract.high.u32 %v556
    %v559 = vmul.u32.u64.compose %v555, %v550
    %v560 = vextract.low.u32 %v559
    %v561 = vextract.high.u32 %v559
    %v562 = vmul.u32 %v555, %v546
    %v563 = vadd.s32 %v558, %v560
    %vm564 = vc.u32 %v558, %v560
    %v565 = vadd.s32 %v561, 1
    %v566 = vsel %vm564, %v565, %v561
    %v567 = vadd.s32 %v562, %v566
    %v568 = vadd.s32 %v567, 536870912
    %v569 = vshrl.u32 %v568, 30
    %v570 = vshll.u32 %v569, 30
    %v571 = vsub.s32 %v567, %v570
    %vm572 = vcmp.lt.s32.totalorder %v571, 0
    %v573 = vsub.s32 0, %v571
    %v574 = vsel %vm572, %v573, %v571
    %v575 = vclz %v574
    %v576 = vsub.s32 %v575, 2
    %vm577 = vcmp.gt.s32.totalorder 0, %v576
    %v578 = vsel %vm577, 0, %v576
    %v579 = vsub.s32 32, %v578
    %v580 = vshll.u32 %v571, %v578
    %v581 = vshrl.u32 %v563, %v579
    %v582 = vor.u32 %v580, %v581
    %v583 = vsub.s32 4294967266, %v578
    %v584 = vadd.s32 %v583, 127
    %v585 = vshll.u32 %v584, 23
    %v586 = vor.u32 4788187, %v585
    %v587 = vand.u32 2147483647, %v586
    %v589 = vcvt.s32.f32 %v582
    %v590 = vmul.f32 %v589, %v587
    %v591 = vxor.u32 %v590, 2147483648
    %v592 = vsel %vm509, %v591, %v590
    %v593 = vsub.s32 4, %v569
    %v594 = vsel %vm509, %v593, %v569
    %v595 = vsel %vm508, %v297, %v592
    %v596 = vsel %vm508, 0, %v594
    %v597 = vcosq.f32.pop %v595
    %v598 = vsinq.f32.pop %v595
    %vm599 = vweird.f32 %v297
    %v600 = vand.u32 %v596, 3
    %vm601 = vcmp.lt.s32.totalorder %v600, 2
    %vm602 = vcmp.eq.s32.totalorder %v600, 0
    %v603 = vxor.u32 %v598, 2147483648
    %v604 = vsel %vm602, %v597, %v603
    %vm605 = vcmp.eq.s32.totalorder %v600, 2
    %v606 = vxor.u32 %v597, 2147483648
    %v607 = vsel %vm605, %v606, %v598
    %v608 = vsel %vm601, %v604, %v607
    %v609 = vsel %vm599, nan, %v608
    %v610 = vand.u32 2147483647, %v298
    %vm611 = vcmp.le.f32.partialorder %v610, 0.7853982
    %vm612 = vcmp.lt.s32.totalorder %v298, 0
    %v613 = vand.u32 %v298, 2139095040
    %v614 = vshrl.u32 %v613, 23
    %v615 = vsub.s32 %v614, 127
    %v616 = vand.u32 2147483647, %v298
    %v617 = vand.u32 %v616, 8388607
    %v618 = vor.u32 %v617, 8388608
    %v619 = vsub.s32 0, %v618
    %v620 = vadd.s32 %v615, 1
    %vm621 = vcmp.gt.s32.totalorder %v620, 0
    %v622 = vsel %vm621, %v620, 0
    %v623 = vshrl.u32 %v622, 5
    %v624 = vand.u32 %v622, 31
    %v625 = vsub.s32 32, %v624
    %v626 = vshrl.u32 683565275, %v625
    %v627 = vshll.u32 683565275, %v624
    %v628 = vshrl.u32 2475754826, %v625
    %v629 = vor.u32 %v627, %v628
    %v630 = vshll.u32 2475754826, %v624
    %v631 = vshrl.u32 2131351028, %v625
    %v632 = vor.u32 %v630, %v631
    %v633 = vshll.u32 2131351028, %v624
    %v634 = vshrl.u32 2102212464, %v625
    %v635 = vor.u32 %v633, %v634
    %v636 = vshll.u32 2102212464, %v624
    %v637 = vshrl.u32 920167782, %v625
    %v638 = vor.u32 %v636, %v637
    %v639 = vshll.u32 920167782, %v624
    %v640 = vshrl.u32 1326507024, %v625
    %v641 = vor.u32 %v639, %v640
    %vm642 = vcmp.lt.s32.totalorder %v623, 1
    %vm643 = vcmp.lt.s32.totalorder %v623, 2
    %vm644 = vcmp.lt.s32.totalorder %v623, 3
    %vm645 = vcmp.lt.s32.totalorder %v623, 4
    %v646 = vsel %vm642, %v626, %v629
    %v647 = vsel %vm645, %v635, 2102212464
    %v648 = vsel %vm644, %v632, %v647
    %v649 = vsel %vm643, %v646, %v648
    %v650 = vsel %vm642, %v629, %v632
    %v651 = vsel %vm645, %v638, 920167782
    %v652 = vsel %vm644, %v635, %v651
    %v653 = vsel %vm643, %v650, %v652
    %v654 = vsel %vm642, %v632, %v635
    %v655 = vsel %vm645, %v641, 1326507024
    %v656 = vsel %vm644, %v638, %v655
    %v657 = vsel %vm643, %v654, %v656
    %v658 = vshll.u32 %v618, 8
    %v659 = vmul.u32.u64.compose %v658, %v657
    %v660 = vextract.low.u32 %v659
    %v661 = vextract.high.u32 %v659
    %v662 = vmul.u32.u64.compose %v658, %v653
    %v663 = vextract.low.u32 %v662
    %v664 = vextract.high.u32 %v662
    %v665 = vmul.u32 %v658, %v649
    %v666 = vadd.s32 %v661, %v663
    %vm667 = vc.u32 %v661, %v663
    %v668 = vadd.s32 %v664, 1
    %v669 = vsel %vm667, %v668, %v664
    %v670 = vadd.s32 %v665, %v669
    %v671 = vadd.s32 %v670, 536870912
    %v672 = vshrl.u32 %v671, 30
    %v673 = vshll.u32 %v672, 30
    %v674 = vsub.s32 %v670, %v673
    %vm675 = vcmp.lt.s32.totalorder %v674, 0
    %v676 = vsub.s32 0, %v674
    %v677 = vsel %vm675, %v676, %v674
    %v678 = vclz %v677
    %v679 = vsub.s32 %v678, 2
    %vm680 = vcmp.gt.s32.totalorder 0, %v679
    %v681 = vsel %vm680, 0, %v679
    %v682 = vsub.s32 32, %v681
    %v683 = vshll.u32 %v674, %v681
    %v684 = vshrl.u32 %v666, %v682
    %v685 = vor.u32 %v683, %v684
    %v686 = vsub.s32 4294967266, %v681
    %v687 = vadd.s32 %v686, 127
    %v688 = vshll.u32 %v687, 23
    %v689 = vor.u32 4788187, %v688
    %v690 = vand.u32 2147483647, %v689
    %v692 = vcvt.s32.f32 %v685
    %v693 = vmul.f32 %v692, %v690
    %v694 = vxor.u32 %v693, 2147483648
    %v695 = vsel %vm612, %v694, %v693
    %v696 = vsub.s32 4, %v672
    %v697 = vsel %vm612, %v696, %v672
    %v698 = vsel %vm611, %v298, %v695
    %v699 = vsel %vm611, 0, %v697
    %v700 = vcosq.f32.pop %v698
    %v701 = vsinq.f32.pop %v698
    %vm702 = vweird.f32 %v298
    %v703 = vand.u32 %v699, 3
    %vm704 = vcmp.lt.s32.totalorder %v703, 2
    %vm705 = vcmp.eq.s32.totalorder %v703, 0
    %v706 = vxor.u32 %v701, 2147483648
    %v707 = vsel %vm705, %v700, %v706
    %vm708 = vcmp.eq.s32.totalorder %v703, 2
    %v709 = vxor.u32 %v700, 2147483648
    %v710 = vsel %vm708, %v709, %v701
    %v711 = vsel %vm704, %v707, %v710
    %v712 = vsel %vm702, nan, %v711
    %v714 = vrot.slane %v609, 1
    %v716 = vmul.f32 %v402, %v714
    %v717 = vrot.slane %v609, 2
    %v719 = vmul.f32 %v716, %v717
    %v721 = vrot.slane %v402, 1
    %v723 = vmul.f32 %v609, %v721
    %v724 = vrot.slane %v402, 2
    %v726 = vmul.f32 %v723, %v724
    %v727 = vsub.f32 %v719, %v726
    %v728 = vmul.f32 %v723, %v717
    %v729 = vmul.f32 %v716, %v724
    %v730 = vadd.f32 %v728, %v729
    %v731 = vmul.f32 %v609, %v714
    %v732 = vmul.f32 %v731, %v724
    %v733 = vmul.f32 %v402, %v721
    %v734 = vmul.f32 %v733, %v717
    %v735 = vsub.f32 %v732, %v734
    %v736 = vmul.f32 %v731, %v717
    %v737 = vmul.f32 %v733, %v724
    %v738 = vadd.f32 %v736, %v737
    %v740 = vrot.slane %v727, 3
    %v742 = vsub.f32 %v727, %v740
    %v743 = vmul.f32 %v742, %v742
    %v745 = vrot.slane %v730, 3
    %v747 = vsub.f32 %v730, %v745
    %v748 = vmul.f32 %v747, %v747
    %v749 = vadd.f32 %v743, %v748
    %v751 = vrot.slane %v735, 3
    %v753 = vsub.f32 %v735, %v751
    %v754 = vmul.f32 %v753, %v753
    %v755 = vadd.f32 %v749, %v754
    %v757 = vrot.slane %v738, 3
    %v759 = vsub.f32 %v738, %v757
    %v760 = vmul.f32 %v759, %v759
    %v761 = vadd.f32 %v755, %v760
    %vm762 = vcmask 1040384
    %v763 = vsel %vm762, %v761, 0.0
    %764 = vadd.xlane.f32.xlu0 %v763
    %v765 = vpop.xlane.xlu0 %764
    %v766 = vrot.slane %v765, 4
    %v767 = vadd.f32 %v765, %v766
    %v768 = vrot.slane %v767, 2
    %v769 = vadd.f32 %v767, %v768
    %v770 = vrot.slane %v769, 1
    %v771 = vadd.f32 %v769, %v770
    %s772 = vtos %v771
    %v773 = vrcp.pop 32.0
    %s774 = vtos %v773
    %s775 = smul.f32 %s772, %s774
    %v776 = vmul.f32 %v402, -2.0
    %v777 = vmul.f32 %v776, %v609
    %v778 = vmul.f32 %v609, %v609
    %v779 = vmul.f32 %v402, %v402
    %v780 = vsub.f32 %v778, %v779
    %v781 = vmul.f32 %v506, -2.0
    %v782 = vmul.f32 %v781, %v712
    %v783 = vmul.f32 %v712, %v712
    %v784 = vmul.f32 %v506, %v506
    %v785 = vsub.f32 %v783, %v784
    %v787 = vrot.slane %v780, 6
    %v789 = vmul.f32 %v785, %v787
    %v791 = vrot.slane %v777, 7
    %v793 = vmul.f32 %v782, %v791
    %v794 = vrot.slane %v777, 6
    %v796 = vmul.f32 %v793, %v794
    %v797 = vsub.f32 %v789, %v796
    %v798 = vsub.f32 0.0, %v785
    %v799 = vmul.f32 %v798, %v794
    %v800 = vmul.f32 %v793, %v787
    %v801 = vsub.f32 %v799, %v800
    %v802 = vrot.slane %v780, 7
    %v804 = vmul.f32 %v782, %v802
    %v805 = vmul.f32 %v782, %v787
    %v806 = vmul.f32 %v785, %v791
    %v807 = vmul.f32 %v806, %v794
    %v808 = vadd.f32 %v805, %v807
    %v809 = vsub.f32 0.0, %v782
    %v810 = vmul.f32 %v809, %v794
    %v811 = vmul.f32 %v806, %v787
    %v812 = vadd.f32 %v810, %v811
    %v813 = vmul.f32 %v798, %v802
    %v814 = vmul.f32 %v780, %v791
    %v815 = vmul.f32 %v780, %v802
    %v817 = vrot.slane %v785, 6
    %v819 = vmul.f32 %v785, %v817
    %v821 = vrot.slane %v782, 7
    %v823 = vmul.f32 %v782, %v821
    %v824 = vrot.slane %v782, 6
    %v826 = vmul.f32 %v823, %v824
    %v827 = vsub.f32 %v819, %v826
    %v828 = vmul.f32 %v798, %v824
    %v829 = vmul.f32 %v823, %v817
    %v830 = vsub.f32 %v828, %v829
    %v831 = vrot.slane %v785, 7
    %v833 = vmul.f32 %v782, %v831
    %v834 = vmul.f32 %v782, %v817
    %v835 = vmul.f32 %v785, %v821
    %v836 = vmul.f32 %v835, %v824
    %v837 = vadd.f32 %v834, %v836
    %v838 = vmul.f32 %v809, %v824
    %v839 = vmul.f32 %v835, %v817
    %v840 = vadd.f32 %v838, %v839
    %v841 = vmul.f32 %v798, %v831
    %v842 = vmul.f32 %v785, %v831
    %v844 = vrot.slane %v827, 3
    %v846 = vmul.f32 %v797, %v844
    %v848 = vrot.slane %v830, 3
    %v850 = vmul.f32 %v801, %v848
    %v851 = vadd.f32 %v846, %v850
    %v853 = vrot.slane %v833, 3
    %v855 = vmul.f32 %v804, %v853
    %v856 = vadd.f32 %v851, %v855
    %v858 = vrot.slane %v837, 3
    %v860 = vmul.f32 %v808, %v858
    %v861 = vadd.f32 %v856, %v860
    %v863 = vrot.slane %v840, 3
    %v865 = vmul.f32 %v812, %v863
    %v866 = vadd.f32 %v861, %v865
    %v868 = vrot.slane %v841, 3
    %v870 = vmul.f32 %v813, %v868
    %v871 = vadd.f32 %v866, %v870
    %v873 = vrot.slane %v835, 3
    %v875 = vmul.f32 %v814, %v873
    %v877 = vrot.slane %v875, 7
    %v879 = vadd.f32 %v871, %v877
    %v881 = vrot.slane %v842, 3
    %v883 = vmul.f32 %v815, %v881
    %v885 = vrot.slane %v883, 7
    %v887 = vadd.f32 %v879, %v885
    %v888 = vrot.slane %v782, 3
    %v890 = vmul.f32 %v777, %v888
    %v892 = vrot.slane %v890, 7
    %v894 = vadd.f32 %v887, %v892
    %v895 = vsub.f32 %v894, 1.0
    %v896 = vmul.f32 %v895, 0.5
    %v897 = vmax.f32 %v896, -1.0
    %v898 = vmin.f32 %v897, 1.0
    %vm901 = vcmask 1044480
    %v902 = vrot.slane %v295, 3
    %v903 = vrot.slane %v296, 3
    %v904 = vsel %vm901, %v902, %v903
    %v906 = vsub.f32 %v295, %v904
    %v907 = vmul.f32 %v906, %v906
    %v909 = vrot.slane %v907, 4
    %vm911 = vcmask 1042432
    %v912 = vsel %vm911, %v909, 0.0
    %913 = vadd.xlane.f32.xlu0 %v912
    %v914 = vpop.xlane.xlu0 %913
    %v915 = vrot.slane %v914, 4
    %v916 = vadd.f32 %v914, %v915
    %v917 = vrot.slane %v916, 2
    %v918 = vadd.f32 %v916, %v917
    %v919 = vrot.slane %v918, 1
    %v920 = vadd.f32 %v918, %v919
    %s921 = vtos %v920
    %v922 = vrcp.pop 24.0
    %s923 = vtos %v922
    %s924 = smul.f32 %s921, %s923
    %v925 = vrot.slane %v296, 1
    %v927 = vmul.f32 %v296, %v925
    %v929 = vrot.slane %v927, 5
    %v931 = vsub.f32 %v927, %v929
    %v932 = vrot.slane %v296, 2
    %v934 = vmul.f32 %v296, %v932
    %v936 = vrot.slane %v934, 5
    %v938 = vsub.f32 %v934, %v936
    %v939 = vmul.f32 %v931, %v931
    %v940 = vmul.f32 %v938, %v938
    %v941 = vadd.f32 %v939, %v940
    %v942 = vrsqrt.pop %v941
    %v943 = vmul.f32 %v941, %v942
    %vm944 = vcmp.eq.f32.partialorder %v941, inf
    %v945 = vsel %vm944, %v941, %v943
    %vm946 = vcmp.eq.f32.partialorder %v941, 0.0
    %v947 = vand.u32 %v941, 2147483648
    %v948 = vsel %vm946, %v947, %v945
    %v949 = vmul.f32 %v948, 100.0
    %v950 = vld [vmem:[#allocation33] sm:$0xf]
    %v952 = vrot.slane %v950, 7
    %v953 = vrot.slane %v952, 2
    %v955 = vsub.f32 %v950, %v953
    %v956 = vmul.f32 %v955, %v955
    %v958 = vlaneseq
    %v959 = vshrl.u32 %v958, 7
    %v960 = vsub.s32 0, %v959
    %v961 = vrot.slane %v956, %v960
    %v962 = vlaneseq
    %v963 = vshrl.u32 %v962, 7
    %v964 = vsub.s32 2, %v963
    %v965 = vrot.slane %v956, %v964
    %v968 = vsel %vm762, %v961, 0.0
    %v969 = vsel %vm762, %v965, 0.0
    %v970 = vadd.f32 %v968, %v969
    %971 = vadd.xlane.f32.xlu0 %v970
    %v972 = vpop.xlane.xlu0 %971
    %v973 = vrot.slane %v972, 4
    %v974 = vadd.f32 %v972, %v973
    %v975 = vrot.slane %v974, 2
    %v976 = vadd.f32 %v974, %v975
    %v977 = vrot.slane %v976, 1
    %v978 = vadd.f32 %v976, %v977
    %s979 = vtos %v978
    %v980 = vrcp.pop 256.0
    %s981 = vtos %v980
    %s982 = smul.f32 %s979, %s981
    %v983 = vlaneseq
    %v984 = vand.u32 %v983, 127
    %vm985 = vcmp.eq.s32.totalorder %v984, 0
    %v986 = vstv %s775
    %v987 = vsel %vm985, %v986, 0.0
    %vm988 = vcmp.eq.s32.totalorder %v984, 1
    %v989 = vstv %s924
    %v990 = vsel %vm988, %v989, %v987
    %vm991 = vcmp.eq.s32.totalorder %v984, 2
    %v992 = vstv %s982
    %v993 = vsel %vm991, %v992, %v990
    %994 = vst [vmem:[%s7] sm:$0x1] %v993
    %995 = vst [vmem:[%s7 + $0x1] sm:$0x1] %v898
    %996 = vst [vmem:[%s7 - $0x3] sm:$0x20] %v949
    // Predicated region
    $region26: #{fn.2} parent=1 // pred_check
      _
    $region27: #{fn.2} parent=1 // pred_check_branch
      %998 = sbr.rel (0) target = $region29
    $region28: #{fn.2} parent=1 // pred_region
      _
    $region29: #{fn.2} parent=1 // pred_fallthru
      _
    // Predicated region
    $region30: #{fn.2} parent=1 // pred_check
      _
    $region31: #{fn.2} parent=1 // pred_check_branch
      %1000 = sbr.rel (0) target = $region33
    $region32: #{fn.2} parent=1 // pred_region
      _
    $region33: #{fn.2} parent=1 // pred_fallthru
      _

</llo_original>
